<compile_context>
chip_gen: v7x
topology: tpu7x:2x2x1
jax: 0.10.0
libtpu: 0.0.40
codegen_flags: <defaults>
</compile_context>

<pallas_src>
import jax
import jax.numpy as jnp
from jax import lax
from jax.experimental import pallas as pl
from jax.experimental.pallas import tpu as pltpu

LANE = 128
SUBLANE = 8

# A statistic tensor whose (layout-padded, f32-equivalent) footprint is at or
# below this goes through the single full-block kernel (no tiling at all).
SMALL_PAIR_BUDGET_BYTES = 512 * 1024

# Per-input-buffer block size for the streaming path.  2 MiB x 2 inputs x 2
# pipeline buffers (+ small accumulator + f32 temporaries) fits v5e's 16 MiB
# default scoped VMEM; on v6e / v7x this can be raised for another ~1.2-1.8x.
TARGET_BLOCK_BYTES = 2 * 1024 * 1024


def _cdiv(a, b):
    return -(-a // b)


def _round_up(a, m):
    return _cdiv(a, m) * m


def _padded_slice_bytes(rest, dsize):
    """Layout-padded bytes of one leading-index slice of shape `rest`."""
    dims = [int(d) for d in rest]
    dims[-1] = _round_up(dims[-1], LANE)
    if len(dims) >= 2:
        dims[-2] = _round_up(dims[-2], SUBLANE * max(1, 4 // dsize))
    n = 1
    for d in dims:
        n *= d
    return n * dsize


def _padded_total_bytes(shape, dsize):
    """Layout-padded VMEM footprint of a whole (rank >= 2) tensor."""
    dims = [int(d) for d in shape]
    dims[-1] = _round_up(dims[-1], LANE)
    dims[-2] = _round_up(dims[-2], SUBLANE)
    n = 1
    for d in dims:
        n *= d
    return n * dsize


def _pick_block_rows(n_rest_dims, slice_bytes, target_block_bytes):
    tb = max(1, int(target_block_bytes) // int(slice_bytes))
    if n_rest_dims == 1:
        # rank-2 blocks: tb is the block's sublane dim -> keep it a multiple
        # of 16 (safe for bf16 sublane packing) and at least 16.
        tb = max(16, (tb // 16) * 16)
    return tb


def _flatten_lane_dense(t):
    # TODO(synk): this ravel/pad/reshape is one extra HBM pass over this single
    # tensor; it is only taken when a tensor is large but its leading axis (or
    # a single leading slice) cannot be tiled in its natural layout.  Real
    # mean/std statistic tensors never hit this branch.
    flat = jnp.ravel(t)
    pad = (-flat.size) % (SUBLANE * LANE)
    if pad:
        flat = jnp.pad(flat, (0, pad))
    return flat.reshape(-1, LANE)


# ----------------------------------------------------------------------------
# Path 1: one full-block kernel for all small statistic tensors (typical case)
# ----------------------------------------------------------------------------
def _make_full_block_kernel(n_pairs, weights):
    w = [float(v) for v in weights]

    def kernel(*refs):                      # refs = preds..., tgts..., out
        o_ref = refs[2 * n_pairs]
        total = jnp.zeros((), jnp.float32)
        for p in range(n_pairs):
            x = refs[p][...].astype(jnp.float32)
            y = refs[n_pairs + p][...].astype(jnp.float32)
            d = x - y
            # per-pair 1/n_elem and the final 1/(len*2) are folded into w[p]
            total = total + jnp.sum(d * d) * w[p]
        o_ref[...] = jnp.zeros_like(o_ref) + total

    return kernel


def _small_pairs_loss(xs, ys, weights):
    """One kernel call covering every small (pred, tgt) pair; no pre-pass."""
    n_pairs = len(xs)
    kernel = _make_full_block_kernel(n_pairs, weights)
    in_specs = [
        pl.BlockSpec(t.shape, (lambda i, _nd=t.ndim: (0,) * _nd))
        for t in xs + ys
    ]
    out = pl.pallas_call(
        kernel,
        out_shape=jax.ShapeDtypeStruct((SUBLANE, LANE), jnp.float32),
        grid_spec=pltpu.PrefetchScalarGridSpec(
            num_scalar_prefetch=0,
            grid=(1,),
            in_specs=in_specs,
            out_specs=pl.BlockSpec((SUBLANE, LANE), lambda i: (0, 0)),
        ),
        compiler_params=pltpu.CompilerParams(
            dimension_semantics=("arbitrary",)),
    )(*xs, *ys)
    return out[0, 0]


# ----------------------------------------------------------------------------
# Path 2: streaming kernel for large statistic tensors (per pair)
# ----------------------------------------------------------------------------
def _make_streaming_sse_kernel(tb, rest, d0):
    if len(rest) >= 2:
        acc_shape = tuple(int(v) for v in rest[-2:])
    else:
        acc_shape = (SUBLANE, int(rest[-1]))   # rank-2: fold rows 8 at a time

    def kernel(x_ref, y_ref, o_ref, acc_ref):
        c = pl.program_id(0)                   # core shard  ("parallel")
        i = pl.program_id(1)                   # block step  ("arbitrary")
        k_pc = pl.num_programs(1)

        @pl.when(i == 0)
        def _():
            acc_ref[...] = jnp.zeros_like(acc_ref)

        x = x_ref[...].astype(jnp.float32)
        y = y_ref[...].astype(jnp.float32)
        d = x - y
        d2 = d * d

        # Mask rows past the true leading extent: only the globally-last block
        # can be ragged; full blocks see an all-true mask (cheap VPU
        # compare+select, hidden under the incoming DMA).
        g = c * k_pc + i
        valid = d0 - g * tb
        row = lax.broadcasted_iota(jnp.int32, d2.shape, 0)
        d2 = jnp.where(row < valid, d2, 0.0)

        # Collapse every leading axis onto axis 0 and sum: pure VPU vreg adds
        # into a small resident accumulator (no full-tile read-modify-write,
        # no per-step XLU reduce).
        acc_ref[...] += d2.reshape((-1,) + acc_shape).sum(axis=0)

        @pl.when(i == k_pc - 1)
        def _():
            # Single cross-lane/sublane reduce per core shard.
            o_ref[...] = jnp.zeros_like(o_ref) + jnp.sum(acc_ref[...])

    return kernel, acc_shape


def _streaming_pair_sse(x, y, tb):
    """Sum of squared differences of one large pair, streamed in leading-axis
    blocks of `tb` rows in the tensors' natural layout."""
    d0 = int(x.shape[0])
    rest = tuple(int(v) for v in x.shape[1:])
    k_total = _cdiv(d0, tb)
    # 2-way "parallel" shard of the block range across TensorCores: engaged
    # only when the split is exact and the per-shard work is large, so 1-TC
    # chips (v5e / v6e) pay only one extra accumulator init + 4 KiB write and
    # 2-TC chips (v7x) shard big reductions across both cores.
    num_cores = 2 if (k_total >= 8 and k_total % 2 == 0) else 1
    k_pc = k_total // num_cores

    kernel, acc_shape = _make_streaming_sse_kernel(tb, rest, d0)
    nrest = len(rest)
    in_spec = pl.BlockSpec(
        (tb,) + rest,
        (lambda c, i, _k=k_pc, _n=nrest: (c * _k + i,) + (0,) * _n))

    # TODO(synk): if profiling shows exposed DMA at step boundaries, the next
    # knob is pipeline_mode=pl.Buffered(3) on the two input specs.
    out = pl.pallas_call(
        kernel,
        out_shape=jax.ShapeDtypeStruct((num_cores, SUBLANE, LANE), jnp.float32),
        grid_spec=pltpu.PrefetchScalarGridSpec(
            num_scalar_prefetch=0,
            grid=(num_cores, k_pc),
            in_specs=[in_spec, in_spec],
            out_specs=pl.BlockSpec((1, SUBLANE, LANE), lambda c, i: (c, 0, 0)),
            scratch_shapes=[pltpu.VMEM(acc_shape, jnp.float32)],
        ),
        compiler_params=pltpu.CompilerParams(
            dimension_semantics=("parallel", "arbitrary")),
    )(x, y)
    return jnp.sum(out[:, 0, 0])


# ----------------------------------------------------------------------------
# Public wrapper: equivalent of ms_Loss.forward(meanstdlist)
# ----------------------------------------------------------------------------
def ms_loss(meanstdlist, *, small_pair_budget_bytes=SMALL_PAIR_BUDGET_BYTES,
            target_block_bytes=TARGET_BLOCK_BYTES):
    # Mirrors PyTorch's `for i in range(len(meanstdlist))`: only the first
    # len(meanstdlist) entries of each inner list are used.
    n_outer = len(meanstdlist)
    pairs = []
    for i in range(n_outer):
        for j in range(2):                     # (mean, std)
            x = jnp.asarray(meanstdlist[0][i][j])
            y = jnp.asarray(meanstdlist[1][i][j])
            if x.shape != y.shape:
                raise ValueError("pred/target statistic shapes must match")
            pairs.append((x, y))
    if not pairs:
        raise ValueError("meanstdlist must be non-empty")
    n_pairs = len(pairs)                       # == len(meanstdlist) * 2

    small_x, small_y, small_w = [], [], []
    contributions = []
    for x, y in pairs:
        n_elem = max(1, int(x.size))
        # per-pair MSE mean (1/n_elem) and the final 1/(len*2) fold into one
        # compile-time weight -> no normalization inside the hot loop.
        w = 1.0 / (float(n_elem) * float(n_pairs))

        if x.ndim == 0:
            x = x.reshape(1, 1)
            y = y.reshape(1, 1)
        elif x.ndim == 1:
            x = x.reshape(1, -1)
            y = y.reshape(1, -1)

        if _padded_total_bytes(x.shape, 4) <= small_pair_budget_bytes:
            small_x.append(x)
            small_y.append(y)
            small_w.append(w)
            continue

        # Large statistic tensor: stream it, tiling its natural leading axis.
        dsize = max(x.dtype.itemsize, y.dtype.itemsize)
        d0 = int(x.shape[0])
        rest = tuple(int(v) for v in x.shape[1:])
        slice_bytes = _padded_slice_bytes(rest, dsize)
        tb = _pick_block_rows(len(rest), slice_bytes, target_block_bytes)
        if tb >= d0 or slice_bytes > target_block_bytes:
            # Leading axis too short (or one leading slice already too big) to
            # tile in natural layout: fall back to a lane-dense 2-D slab.
            x = _flatten_lane_dense(x)
            y = _flatten_lane_dense(y)
            d0, rest = int(x.shape[0]), (LANE,)
            tb = min(_pick_block_rows(1, LANE * dsize, target_block_bytes), d0)
        contributions.append(_streaming_pair_sse(x, y, tb) * w)

    if small_x:
        contributions.append(_small_pairs_loss(small_x, small_y, small_w))

    loss = contributions[0]
    for c in contributions[1:]:
        loss = loss + c
    return loss


def _reference(meanstdlist):
    """Pure-JAX reference mirroring the PyTorch loop exactly."""
    loss = jnp.float32(0.0)
    for i in range(len(meanstdlist)):
        a_m, a_s = meanstdlist[0][i][0], meanstdlist[0][i][1]
        b_m, b_s = meanstdlist[1][i][0], meanstdlist[1][i][1]
        loss = jnp.mean((a_m.astype(jnp.float32) - b_m.astype(jnp.float32)) ** 2) + loss
        loss = jnp.mean((a_s.astype(jnp.float32) - b_s.astype(jnp.float32)) ** 2) + loss
    return loss / (len(meanstdlist) * 2)


if __name__ == "__main__":
    # --- Test 1: the module's real use case -- small per-channel statistics.
    key = jax.random.PRNGKey(0)
    B, C = 2, 8
    n_inner = 3     # inner lists longer than len(meanstdlist)=2 on purpose:
                    # only the first 2 entries are used, mirroring PyTorch.
    keys = jax.random.split(key, 4 * n_inner)
    A = [(jax.random.normal(keys[4 * i + 0], (B, C), jnp.float32),
          jax.random.normal(keys[4 * i + 1], (B, C), jnp.float32))
         for i in range(n_inner)]
    T = [(jax.random.normal(keys[4 * i + 2], (B, C), jnp.float32),
          jax.random.normal(keys[4 * i + 3], (B, C), jnp.float32))
         for i in range(n_inner)]
    meanstdlist = (A, T)

    loss = jax.block_until_ready(ms_loss(meanstdlist))
    ref = _reference(meanstdlist)
    assert jnp.allclose(loss, ref, rtol=1e-4, atol=1e-6), (loss, ref)

    # --- Test 2: force the streaming (tiled) path at small shapes to exercise
    # leading-axis tiling, ragged-block masking, both accumulator layouts
    # (rank-2 and rank-3) and the 2-way core split.
    k2 = jax.random.split(jax.random.PRNGKey(0), 8)
    A2 = [(jax.random.normal(k2[0], (100, 24), jnp.float32),
           jax.random.normal(k2[1], (100, 24), jnp.float32)),
          (jax.random.normal(k2[2], (20, 4, 136), jnp.float32),
           jax.random.normal(k2[3], (20, 4, 136), jnp.float32))]
    T2 = [(jax.random.normal(k2[4], (100, 24), jnp.float32),
           jax.random.normal(k2[5], (100, 24), jnp.float32)),
          (jax.random.normal(k2[6], (20, 4, 136), jnp.float32),
           jax.random.normal(k2[7], (20, 4, 136), jnp.float32))]
    msl2 = (A2, T2)

    loss2 = jax.block_until_ready(
        ms_loss(msl2, small_pair_budget_bytes=0, target_block_bytes=16 * 1024))
    ref2 = _reference(msl2)
    assert jnp.allclose(loss2, ref2, rtol=1e-4, atol=1e-6), (loss2, ref2)

    print("KERNEL_OK")
</pallas_src>

<mosaic_0001>
module attributes {stable_mosaic.version = 11 : i64} {
  func.func @kernel(%arg0: i32, %arg1: memref<2x8xf32, #tpu.memory_space<vmem>>, %arg2: memref<2x8xf32, #tpu.memory_space<vmem>>, %arg3: memref<2x8xf32, #tpu.memory_space<vmem>>, %arg4: memref<2x8xf32, #tpu.memory_space<vmem>>, %arg5: memref<2x8xf32, #tpu.memory_space<vmem>>, %arg6: memref<2x8xf32, #tpu.memory_space<vmem>>, %arg7: memref<2x8xf32, #tpu.memory_space<vmem>>, %arg8: memref<2x8xf32, #tpu.memory_space<vmem>>, %arg9: memref<8x128xf32, #tpu.memory_space<vmem>>) attributes {dimension_semantics = [#tpu.dimension_semantics<arbitrary>], iteration_bounds = array<i64: 1>, scalar_prefetch = 0 : i64, scratch_operands = 0 : i64, tpu.core_type = #tpu.core_type<tc>, window_params = [{pipeline_mode = #tpu.pipeline_mode<synchronous>, transform_indices = @transform_0, window_bounds = array<i64: 2, 8>}, {pipeline_mode = #tpu.pipeline_mode<synchronous>, transform_indices = @transform_1, window_bounds = array<i64: 2, 8>}, {pipeline_mode = #tpu.pipeline_mode<synchronous>, transform_indices = @transform_2, window_bounds = array<i64: 2, 8>}, {pipeline_mode = #tpu.pipeline_mode<synchronous>, transform_indices = @transform_3, window_bounds = array<i64: 2, 8>}, {pipeline_mode = #tpu.pipeline_mode<synchronous>, transform_indices = @transform_4, window_bounds = array<i64: 2, 8>}, {pipeline_mode = #tpu.pipeline_mode<synchronous>, transform_indices = @transform_5, window_bounds = array<i64: 2, 8>}, {pipeline_mode = #tpu.pipeline_mode<synchronous>, transform_indices = @transform_6, window_bounds = array<i64: 2, 8>}, {pipeline_mode = #tpu.pipeline_mode<synchronous>, transform_indices = @transform_7, window_bounds = array<i64: 2, 8>}, {pipeline_mode = #tpu.pipeline_mode<synchronous>, transform_indices = @transform_8, window_bounds = array<i64: 8, 128>}]} {
    %c0 = arith.constant 0 : index
    %c0_0 = arith.constant 0 : index
    %0 = vector.load %arg1[%c0, %c0_0] : memref<2x8xf32, #tpu.memory_space<vmem>>, vector<2x8xf32>
    %c0_1 = arith.constant 0 : index
    %c0_2 = arith.constant 0 : index
    %1 = vector.load %arg5[%c0_1, %c0_2] : memref<2x8xf32, #tpu.memory_space<vmem>>, vector<2x8xf32>
    %2 = arith.subf %0, %1 : vector<2x8xf32>
    %3 = arith.mulf %2, %2 : vector<2x8xf32>
    %4 = vector.shape_cast %3 : vector<2x8xf32> to vector<1x2x8xf32>
    %cst = arith.constant dense<0.000000e+00> : vector<1xf32>
    %5 = vector.multi_reduction <add>, %4, %cst [1, 2] : vector<1x2x8xf32> to vector<1xf32>
    %6 = vector.shape_cast %5 : vector<1xf32> to vector<1x1x1xf32>
    %7 = vector.extract %6[0, 0, 0] : f32 from vector<1x1x1xf32>
    %cst_3 = arith.constant 1.562500e-02 : f32
    %8 = arith.mulf %7, %cst_3 : f32
    %cst_4 = arith.constant 0.000000e+00 : f32
    %9 = arith.addf %cst_4, %8 : f32
    %c0_5 = arith.constant 0 : index
    %c0_6 = arith.constant 0 : index
    %10 = vector.load %arg2[%c0_5, %c0_6] : memref<2x8xf32, #tpu.memory_space<vmem>>, vector<2x8xf32>
    %c0_7 = arith.constant 0 : index
    %c0_8 = arith.constant 0 : index
    %11 = vector.load %arg6[%c0_7, %c0_8] : memref<2x8xf32, #tpu.memory_space<vmem>>, vector<2x8xf32>
    %12 = arith.subf %10, %11 : vector<2x8xf32>
    %13 = arith.mulf %12, %12 : vector<2x8xf32>
    %14 = vector.shape_cast %13 : vector<2x8xf32> to vector<1x2x8xf32>
    %cst_9 = arith.constant dense<0.000000e+00> : vector<1xf32>
    %15 = vector.multi_reduction <add>, %14, %cst_9 [1, 2] : vector<1x2x8xf32> to vector<1xf32>
    %16 = vector.shape_cast %15 : vector<1xf32> to vector<1x1x1xf32>
    %17 = vector.extract %16[0, 0, 0] : f32 from vector<1x1x1xf32>
    %cst_10 = arith.constant 1.562500e-02 : f32
    %18 = arith.mulf %17, %cst_10 : f32
    %19 = arith.addf %9, %18 : f32
    %c0_11 = arith.constant 0 : index
    %c0_12 = arith.constant 0 : index
    %20 = vector.load %arg3[%c0_11, %c0_12] : memref<2x8xf32, #tpu.memory_space<vmem>>, vector<2x8xf32>
    %c0_13 = arith.constant 0 : index
    %c0_14 = arith.constant 0 : index
    %21 = vector.load %arg7[%c0_13, %c0_14] : memref<2x8xf32, #tpu.memory_space<vmem>>, vector<2x8xf32>
    %22 = arith.subf %20, %21 : vector<2x8xf32>
    %23 = arith.mulf %22, %22 : vector<2x8xf32>
    %24 = vector.shape_cast %23 : vector<2x8xf32> to vector<1x2x8xf32>
    %cst_15 = arith.constant dense<0.000000e+00> : vector<1xf32>
    %25 = vector.multi_reduction <add>, %24, %cst_15 [1, 2] : vector<1x2x8xf32> to vector<1xf32>
    %26 = vector.shape_cast %25 : vector<1xf32> to vector<1x1x1xf32>
    %27 = vector.extract %26[0, 0, 0] : f32 from vector<1x1x1xf32>
    %cst_16 = arith.constant 1.562500e-02 : f32
    %28 = arith.mulf %27, %cst_16 : f32
    %29 = arith.addf %19, %28 : f32
    %c0_17 = arith.constant 0 : index
    %c0_18 = arith.constant 0 : index
    %30 = vector.load %arg4[%c0_17, %c0_18] : memref<2x8xf32, #tpu.memory_space<vmem>>, vector<2x8xf32>
    %c0_19 = arith.constant 0 : index
    %c0_20 = arith.constant 0 : index
    %31 = vector.load %arg8[%c0_19, %c0_20] : memref<2x8xf32, #tpu.memory_space<vmem>>, vector<2x8xf32>
    %32 = arith.subf %30, %31 : vector<2x8xf32>
    %33 = arith.mulf %32, %32 : vector<2x8xf32>
    %34 = vector.shape_cast %33 : vector<2x8xf32> to vector<1x2x8xf32>
    %cst_21 = arith.constant dense<0.000000e+00> : vector<1xf32>
    %35 = vector.multi_reduction <add>, %34, %cst_21 [1, 2] : vector<1x2x8xf32> to vector<1xf32>
    %36 = vector.shape_cast %35 : vector<1xf32> to vector<1x1x1xf32>
    %37 = vector.extract %36[0, 0, 0] : f32 from vector<1x1x1xf32>
    %cst_22 = arith.constant 1.562500e-02 : f32
    %38 = arith.mulf %37, %cst_22 : f32
    %39 = arith.addf %29, %38 : f32
    %cst_23 = arith.constant 0.000000e+00 : f32
    %40 = vector.broadcast %cst_23 : f32 to vector<8x128xf32>
    %41 = vector.broadcast %39 : f32 to vector<8x128xf32>
    %42 = arith.addf %40, %41 : vector<8x128xf32>
    %c0_24 = arith.constant 0 : index
    %c0_25 = arith.constant 0 : index
    %43 = vector.load %arg9[%c0_24, %c0_25] : memref<8x128xf32, #tpu.memory_space<vmem>>, vector<8x128xf32>
    tpu.vector_store %arg9[%c0_24, %c0_25], %42 {strides = array<i32>} : memref<8x128xf32, #tpu.memory_space<vmem>>, vector<8x128xf32>,
    return
  }
  func.func @transform_0(%arg0: i32) -> (i32, i32) {
    %c0_i32 = arith.constant 0 : i32
    %c0_i32_0 = arith.constant 0 : i32
    %c0_i32_1 = arith.constant 0 : i32
    return %c0_i32, %c0_i32_0 : i32, i32
  }
  func.func @transform_1(%arg0: i32) -> (i32, i32) {
    %c0_i32 = arith.constant 0 : i32
    %c0_i32_0 = arith.constant 0 : i32
    %c0_i32_1 = arith.constant 0 : i32
    return %c0_i32, %c0_i32_0 : i32, i32
  }
  func.func @transform_2(%arg0: i32) -> (i32, i32) {
    %c0_i32 = arith.constant 0 : i32
    %c0_i32_0 = arith.constant 0 : i32
    %c0_i32_1 = arith.constant 0 : i32
    return %c0_i32, %c0_i32_0 : i32, i32
  }
  func.func @transform_3(%arg0: i32) -> (i32, i32) {
    %c0_i32 = arith.constant 0 : i32
    %c0_i32_0 = arith.constant 0 : i32
    %c0_i32_1 = arith.constant 0 : i32
    return %c0_i32, %c0_i32_0 : i32, i32
  }
  func.func @transform_4(%arg0: i32) -> (i32, i32) {
    %c0_i32 = arith.constant 0 : i32
    %c0_i32_0 = arith.constant 0 : i32
    %c0_i32_1 = arith.constant 0 : i32
    return %c0_i32, %c0_i32_0 : i32, i32
  }
  func.func @transform_5(%arg0: i32) -> (i32, i32) {
    %c0_i32 = arith.constant 0 : i32
    %c0_i32_0 = arith.constant 0 : i32
    %c0_i32_1 = arith.constant 0 : i32
    return %c0_i32, %c0_i32_0 : i32, i32
  }
  func.func @transform_6(%arg0: i32) -> (i32, i32) {
    %c0_i32 = arith.constant 0 : i32
    %c0_i32_0 = arith.constant 0 : i32
    %c0_i32_1 = arith.constant 0 : i32
    return %c0_i32, %c0_i32_0 : i32, i32
  }
  func.func @transform_7(%arg0: i32) -> (i32, i32) {
    %c0_i32 = arith.constant 0 : i32
    %c0_i32_0 = arith.constant 0 : i32
    %c0_i32_1 = arith.constant 0 : i32
    return %c0_i32, %c0_i32_0 : i32, i32
  }
  func.func @transform_8(%arg0: i32) -> (i32, i32) {
    %c0_i32 = arith.constant 0 : i32
    %c0_i32_0 = arith.constant 0 : i32
    %c0_i32_1 = arith.constant 0 : i32
    return %c0_i32, %c0_i32_0 : i32, i32
  }
}

</mosaic_0001>

<llo_original>
// kernel: tpu_custom_call.1
$region0: #{tpu_custom_call.1}
  #allocation0 [shape = 'u32[]', space=smem, size = 0x4, offset = 0x4, fixed_abs, tag = 'smem constant byte address 0x4 - core index']
  #allocation1 [shape = 'u32[144,128]{1,0:T(1,128)}', space=vmem, size = 0x12000, scoped, tag = 'internal scratch']
  %s0 = inlined_call_operand.hbm [shape: f32[2,8], index: 0, kind: input, shape index: {}]
  %s1 = inlined_call_operand.vmem [shape: f32[2,8], index: 1, kind: input, shape index: {}]
  %s2 = inlined_call_operand.vmem [shape: f32[2,8], index: 2, kind: input, shape index: {}]
  %s3 = inlined_call_operand.vmem [shape: f32[2,8], index: 3, kind: input, shape index: {}]
  %s4 = inlined_call_operand.vmem [shape: f32[2,8], index: 4, kind: input, shape index: {}]
  %s5 = inlined_call_operand.vmem [shape: f32[2,8], index: 5, kind: input, shape index: {}]
  %s6 = inlined_call_operand.vmem [shape: f32[2,8], index: 6, kind: input, shape index: {}]
  %s7 = inlined_call_operand.vmem [shape: f32[2,8], index: 7, kind: input, shape index: {}]
  %s8 = inlined_call_operand.hbm [shape: f32[8,128], index: 8, kind: output, shape index: {}]
  %s9 = sld [smem:[#allocation0]]
  $region46: #{tpu_custom_call.1} parent=0
    _
  %s11 = ssub.s32 1, %s9
  %s12 = scalar_select 0, %s11, %s9
  $region1: #{tpu_custom_call.1} parent=0
    #allocation2 [shape = 'u8[1024]{0}', space=vmem, size = 0x400, scoped, tag = 'input window, operand 0, single buffered']
    #allocation3 [shape = 's32[1]{0}', space=sflag, size = 0x4, scoped, tag = 'scoped memory for tpu_custom_call.1']
    #allocation4 [shape = 's32[1]{0}', space=sflag, size = 0x4, scoped, tag = 'scoped memory for tpu_custom_call.1']
    #allocation5 [shape = 'u8[4096]{0}', space=vmem, size = 0x1000, scoped, tag = 'output window, operand 0, single buffered']
    %13 = vsyncpa [#allocation3], 0
    %14 = vsyncpa [#allocation4], 0
    // Predicated region
    $region2: #{tpu_custom_call.1} parent=1 // pred_check
      _
    $region3: #{tpu_custom_call.1} parent=1 // pred_check_branch
      %16 = sbr.rel (0) target = $region5
    $region4: #{tpu_custom_call.1} parent=1 // pred_region
      %s18 = ssub.s32 32, 32
      %19 = vsyncadd [#allocation3], %s18
      %s21 = sshll.u32 [#allocation2], 4
      %s22 = int_to_ptr.vmem [resolvable:$true] %s21
      %24 = dma.hbm_to_vmem [thread:$0]  %s0, 32, %s22, [#allocation3]
    $region5: #{tpu_custom_call.1} parent=1 // pred_fallthru
      _
    // Predicated region
    $region6: #{tpu_custom_call.1} parent=1 // pred_check
      _
    $region7: #{tpu_custom_call.1} parent=1 // pred_check_branch
      %26 = sbr.rel (0) target = $region9
    $region8: #{tpu_custom_call.1} parent=1 // pred_region
      _
    $region9: #{tpu_custom_call.1} parent=1 // pred_fallthru
      _
    // Predicated region
    $region10: #{tpu_custom_call.1} parent=1 // pred_check
      _
    $region11: #{tpu_custom_call.1} parent=1 // pred_check_branch
      %28 = sbr.rel (0) target = $region13
    $region12: #{tpu_custom_call.1} parent=1 // pred_region
      _
    $region13: #{tpu_custom_call.1} parent=1 // pred_fallthru
      _
    // Predicated region
    $region14: #{tpu_custom_call.1} parent=1 // pred_check
      _
    $region15: #{tpu_custom_call.1} parent=1 // pred_check_branch
      %30 = sbr.rel (0) target = $region17
    $region16: #{tpu_custom_call.1} parent=1 // pred_region
      _
    $region17: #{tpu_custom_call.1} parent=1 // pred_fallthru
      _
    // Predicated region
    $region18: #{tpu_custom_call.1} parent=1 // pred_check
      _
    $region19: #{tpu_custom_call.1} parent=1 // pred_check_branch
      %32 = sbr.rel (0) target = $region21
    $region20: #{tpu_custom_call.1} parent=1 // pred_region
      _
    $region21: #{tpu_custom_call.1} parent=1 // pred_fallthru
      _
    // Predicated region
    $region22: #{tpu_custom_call.1} parent=1 // pred_check
      _
    $region23: #{tpu_custom_call.1} parent=1 // pred_check_branch
      %34 = sbr.rel (0) target = $region25
    $region24: #{tpu_custom_call.1} parent=1 // pred_region
      _
    $region25: #{tpu_custom_call.1} parent=1 // pred_fallthru
      _
    // Predicated region
    $region26: #{tpu_custom_call.1} parent=1 // pred_check
      _
    $region27: #{tpu_custom_call.1} parent=1 // pred_check_branch
      %36 = sbr.rel (0) target = $region29
    $region28: #{tpu_custom_call.1} parent=1 // pred_region
      _
    $region29: #{tpu_custom_call.1} parent=1 // pred_fallthru
      _
    // Predicated region
    $region30: #{tpu_custom_call.1} parent=1 // pred_check
      _
    $region31: #{tpu_custom_call.1} parent=1 // pred_check_branch
      %38 = sbr.rel (0) target = $region33
    $region32: #{tpu_custom_call.1} parent=1 // pred_region
      _
    $region33: #{tpu_custom_call.1} parent=1 // pred_fallthru
      _
    // Predicated region
    $region34: #{tpu_custom_call.1} parent=1 // pred_check
      _
    $region35: #{tpu_custom_call.1} parent=1 // pred_check_branch
      %40 = sbr.rel (0) target = $region37
    $region36: #{tpu_custom_call.1} parent=1 // pred_region
      %41 = dma.done [#allocation3], 32
    $region37: #{tpu_custom_call.1} parent=1 // pred_fallthru
      _
    %v42 = vld [vmem:[#allocation2] sm:$0x3]
    %v43 = vld [vmem:[%s4] sm:$0x3]
    %v44 = vsub.f32 %v42, %v43
    %v45 = vmul.f32 %v44, %v44
    %vm46 = vcmask 58368
    %v47 = vsel %vm46, %v45, 0.0
    %48 = vadd.xlane.f32.xlu0 %v47
    %v49 = vpop.xlane.xlu0 %48
    %v50 = vrot.slane %v49, 4
    %v51 = vadd.f32 %v49, %v50
    %v52 = vrot.slane %v51, 2
    %v53 = vadd.f32 %v51, %v52
    %v54 = vrot.slane %v53, 1
    %v55 = vadd.f32 %v53, %v54
    %s56 = vtos %v55
    %s57 = smul.f32 %s56, 0.015625
    %s58 = sadd.f32 %s57, 0.0
    %v59 = vld [vmem:[%s1] sm:$0x3]
    %v60 = vld [vmem:[%s5] sm:$0x3]
    %v61 = vsub.f32 %v59, %v60
    %v62 = vmul.f32 %v61, %v61
    %v63 = vsel %vm46, %v62, 0.0
    %64 = vadd.xlane.f32.xlu0 %v63
    %v65 = vpop.xlane.xlu0 %64
    %v66 = vrot.slane %v65, 4
    %v67 = vadd.f32 %v65, %v66
    %v68 = vrot.slane %v67, 2
    %v69 = vadd.f32 %v67, %v68
    %v70 = vrot.slane %v69, 1
    %v71 = vadd.f32 %v69, %v70
    %s72 = vtos %v71
    %s73 = smul.f32 %s72, 0.015625
    %s74 = sadd.f32 %s58, %s73
    %v75 = vld [vmem:[%s2] sm:$0x3]
    %v76 = vld [vmem:[%s6] sm:$0x3]
    %v77 = vsub.f32 %v75, %v76
    %v78 = vmul.f32 %v77, %v77
    %v79 = vsel %vm46, %v78, 0.0
    %80 = vadd.xlane.f32.xlu0 %v79
    %v81 = vpop.xlane.xlu0 %80
    %v82 = vrot.slane %v81, 4
    %v83 = vadd.f32 %v81, %v82
    %v84 = vrot.slane %v83, 2
    %v85 = vadd.f32 %v83, %v84
    %v86 = vrot.slane %v85, 1
    %v87 = vadd.f32 %v85, %v86
    %s88 = vtos %v87
    %s89 = smul.f32 %s88, 0.015625
    %s90 = sadd.f32 %s74, %s89
    %v91 = vld [vmem:[%s3] sm:$0x3]
    %v92 = vld [vmem:[%s7] sm:$0x3]
    %v93 = vsub.f32 %v91, %v92
    %v94 = vmul.f32 %v93, %v93
    %v95 = vsel %vm46, %v94, 0.0
    %96 = vadd.xlane.f32.xlu0 %v95
    %v97 = vpop.xlane.xlu0 %96
    %v98 = vrot.slane %v97, 4
    %v99 = vadd.f32 %v97, %v98
    %v100 = vrot.slane %v99, 2
    %v101 = vadd.f32 %v99, %v100
    %v102 = vrot.slane %v101, 1
    %v103 = vadd.f32 %v101, %v102
    %s104 = vtos %v103
    %s105 = smul.f32 %s104, 0.015625
    %s106 = sadd.f32 %s90, %s105
    %v107 = vstv %s106
    %v108 = vadd.f32 %v107, 0.0
    %109 = vst [vmem:[#allocation5] sm:$0xff] %v108
    // Predicated region
    $region38: #{tpu_custom_call.1} parent=1 // pred_check
      _
    $region39: #{tpu_custom_call.1} parent=1 // pred_check_branch
      %111 = sbr.rel (0) target = $region41
    $region40: #{tpu_custom_call.1} parent=1 // pred_region
      %s113 = ssub.s32 128, 128
      %114 = vsyncadd [#allocation4], %s113
      %s116 = sshll.u32 [#allocation5], 4
      %s117 = int_to_ptr.vmem [resolvable:$true] %s116
      %119 = dma.vmem_to_hbm [thread:$0]  %s117, 128, %s8, [#allocation4]
    $region41: #{tpu_custom_call.1} parent=1 // pred_fallthru
      _
    // Predicated region
    $region42: #{tpu_custom_call.1} parent=1 // pred_check
      _
    $region43: #{tpu_custom_call.1} parent=1 // pred_check_branch
      %121 = sbr.rel (0) target = $region45
    $region44: #{tpu_custom_call.1} parent=1 // pred_region
      %122 = dma.done [#allocation4], 128
    $region45: #{tpu_custom_call.1} parent=1 // pred_fallthru
      _
    %123 = vsyncpa [#allocation3], 1
    %124 = vsyncpa [#allocation4], 1

</llo_original>
